<compile_context>
chip_gen: v6e
topology: v6e:2x2x1
jax: 0.10.0
libtpu: 0.0.40
codegen_flags: <defaults>
</compile_context>

<pallas_src>
import jax
import jax.numpy as jnp
from jax.experimental import pallas as pl
from jax.experimental.pallas import tpu as pltpu


def mlp_kernel(x_ref, w1_ref, b1_ref, w2_ref, b2_ref, w3_ref, b3_ref, o_ref):
    # fc1 -> ReLU   (dropout1 = identity in eval mode)
    xb = x_ref[...].astype(jnp.bfloat16)      # in-kernel cast (no extra wrapper pass)
    h1 = jnp.dot(xb, w1_ref[...], preferred_element_type=jnp.float32)
    h1 = jnp.maximum(h1 + b1_ref[...], 0.0)
    # fc2 -> ReLU   (dropout2 = identity in eval mode)
    h2 = jnp.dot(h1.astype(jnp.bfloat16), w2_ref[...],
                 preferred_element_type=jnp.float32)
    h2 = jnp.maximum(h2 + b2_ref[...], 0.0)
    # fc3: narrow 2-lane output stored directly (no 128-lane pad / inflated writeback)
    h3 = jnp.dot(h2.astype(jnp.bfloat16), w3_ref[...],
                 preferred_element_type=jnp.float32)
    o_ref[...] = (h3 + b3_ref[...]).astype(o_ref.dtype)


def _round_up(x, m):
    return (x + m - 1) // m * m


def prepare_params(params):
    """One-time dtype prep (bf16 weights for the MXU, f32 biases) outside the hot path."""
    return dict(
        w1=params["w1"].astype(jnp.bfloat16),
        w2=params["w2"].astype(jnp.bfloat16),
        w3=params["w3"].astype(jnp.bfloat16),
        b1=params["b1"].astype(jnp.float32).reshape(1, -1),
        b2=params["b2"].astype(jnp.float32).reshape(1, -1),
        b3=params["b3"].astype(jnp.float32).reshape(1, -1),
    )


def simple_nn_forward(x, params, *, tb_max=2048):
    """x: (B, input_dim) float32. Fused fc1->ReLU->fc2->ReLU->fc3 (dropout = eval identity).

    `params` should come from prepare_params() (bf16 weights, f32 (1, out) biases).
    """
    B, D = x.shape
    w1, b1 = params["w1"], params["b1"]
    w2, b2 = params["w2"], params["b2"]
    w3, b3 = params["w3"], params["b3"]
    out_dim = w3.shape[1]

    # Batch tiling: multiples of 128 (clean bf16 sublane/lane layout), large tiles
    # to amortize per-step overhead, and >=2 grid steps when the batch allows it
    # (feeds both TensorCores on v7x through the "parallel" axis).
    b128 = _round_up(B, 128)
    tb = min(tb_max, b128)
    if b128 // tb < 2 and b128 >= 256:
        tb = _round_up(b128 // 2, 128)
    b_pad = _round_up(B, tb)
    nb = b_pad // tb

    if b_pad == B:
        # Already tile-aligned: feed f32 x straight to the kernel (4 B/elem HBM read,
        # no separate wrapper cast pass).
        x_in = x
    else:
        # Padding needed anyway: fuse pad + bf16 cast into one wrapper pass.
        x_in = jnp.pad(x, ((0, b_pad - B), (0, 0))).astype(jnp.bfloat16)

    # Weights/biases: same (0, 0) block every grid step -> stay resident in VMEM.
    resident = lambda arr: pl.BlockSpec(arr.shape, lambda i: (0,) * arr.ndim)

    flops = 2 * b_pad * (D * w1.shape[1] + w1.shape[1] * w2.shape[1]
                         + w2.shape[1] * out_dim)
    bytes_accessed = (x_in.size * x_in.dtype.itemsize
                      + sum(a.size * a.dtype.itemsize
                            for a in (w1, b1, w2, b2, w3, b3))
                      + b_pad * out_dim * 4)

    out = pl.pallas_call(
        mlp_kernel,
        out_shape=jax.ShapeDtypeStruct((b_pad, out_dim), jnp.float32),
        grid_spec=pltpu.PrefetchScalarGridSpec(
            num_scalar_prefetch=0,
            grid=(nb,),
            in_specs=[
                pl.BlockSpec((tb, D), lambda i: (i, 0)),   # x: tiled over batch
                resident(w1), resident(b1),
                resident(w2), resident(b2),
                resident(w3), resident(b3),
            ],
            out_specs=pl.BlockSpec((tb, out_dim), lambda i: (i, 0)),
        ),
        compiler_params=pltpu.CompilerParams(
            dimension_semantics=("parallel",)),
        cost_estimate=pl.CostEstimate(
            flops=flops, transcendentals=0, bytes_accessed=bytes_accessed),
    )(x_in, w1, b1, w2, b2, w3, b3)

    return out[:B]


def init_params(key, input_dim):
    """Deterministic init mimicking PyTorch Linear's uniform(-1/sqrt(fan_in), +)."""
    def linear(key, fan_in, fan_out):
        kw, kb = jax.random.split(key)
        bound = 1.0 / jnp.sqrt(fan_in)
        # store weight as (fan_in, fan_out) == W.T so kernel computes x @ W
        w = jax.random.uniform(kw, (fan_in, fan_out), jnp.float32, -bound, bound)
        b = jax.random.uniform(kb, (1, fan_out), jnp.float32, -bound, bound)
        return w, b

    k1, k2, k3 = jax.random.split(key, 3)
    w1, b1 = linear(k1, input_dim, 128)
    w2, b2 = linear(k2, 128, 64)
    w3, b3 = linear(k3, 64, 2)
    return dict(w1=w1, b1=b1, w2=w2, b2=b2, w3=w3, b3=b3)


def reference_forward(x, p):
    h = jnp.maximum(x @ p["w1"] + p["b1"], 0.0)
    h = jnp.maximum(h @ p["w2"] + p["b2"], 0.0)
    return h @ p["w3"] + p["b3"]


if __name__ == "__main__":
    key = jax.random.PRNGKey(0)
    k_in, k_param = jax.random.split(key)

    batch, input_dim = 8, 32
    x = jax.random.normal(k_in, (batch, input_dim), jnp.float32)
    params = init_params(k_param, input_dim)

    prepared = prepare_params(params)          # one-time dtype prep
    fwd = jax.jit(simple_nn_forward)

    out = fwd(x, prepared)
    out = jax.block_until_ready(out)

    ref = reference_forward(x, params)         # pure-f32 reference
    assert out.shape == (batch, 2)
    # Tolerance relaxed relative to a pure-f32 run because x/weights/h1/h2 go through bf16.
    assert jnp.allclose(out, ref, atol=2e-2, rtol=2e-2), "mismatch vs JAX reference"

    print("KERNEL_OK")
</pallas_src>

<mosaic_0001>
module attributes {stable_mosaic.version = 11 : i64} {
  func.func @mlp_kernel(%arg0: i32, %arg1: memref<128x32xbf16, #tpu.memory_space<vmem>>, %arg2: memref<32x128xbf16, #tpu.memory_space<vmem>>, %arg3: memref<1x128xf32, #tpu.memory_space<vmem>>, %arg4: memref<128x64xbf16, #tpu.memory_space<vmem>>, %arg5: memref<1x64xf32, #tpu.memory_space<vmem>>, %arg6: memref<64x2xbf16, #tpu.memory_space<vmem>>, %arg7: memref<1x2xf32, #tpu.memory_space<vmem>>, %arg8: memref<128x2xf32, #tpu.memory_space<vmem>>) attributes {dimension_semantics = [#tpu.dimension_semantics<parallel>], iteration_bounds = array<i64: 1>, scalar_prefetch = 0 : i64, scratch_operands = 0 : i64, tpu.core_type = #tpu.core_type<tc>, window_params = [{transform_indices = @transform_0, window_bounds = array<i64: 128, 32>}, {pipeline_mode = #tpu.pipeline_mode<synchronous>, transform_indices = @transform_1, window_bounds = array<i64: 32, 128>}, {pipeline_mode = #tpu.pipeline_mode<synchronous>, transform_indices = @transform_2, window_bounds = array<i64: 1, 128>}, {pipeline_mode = #tpu.pipeline_mode<synchronous>, transform_indices = @transform_3, window_bounds = array<i64: 128, 64>}, {pipeline_mode = #tpu.pipeline_mode<synchronous>, transform_indices = @transform_4, window_bounds = array<i64: 1, 64>}, {pipeline_mode = #tpu.pipeline_mode<synchronous>, transform_indices = @transform_5, window_bounds = array<i64: 64, 2>}, {pipeline_mode = #tpu.pipeline_mode<synchronous>, transform_indices = @transform_6, window_bounds = array<i64: 1, 2>}, {transform_indices = @transform_7, window_bounds = array<i64: 128, 2>}]} {
    %c0 = arith.constant 0 : index
    %c0_0 = arith.constant 0 : index
    %0 = vector.load %arg1[%c0, %c0_0] : memref<128x32xbf16, #tpu.memory_space<vmem>>, vector<128x32xbf16>
    %c0_1 = arith.constant 0 : index
    %c0_2 = arith.constant 0 : index
    %1 = vector.load %arg2[%c0_1, %c0_2] : memref<32x128xbf16, #tpu.memory_space<vmem>>, vector<32x128xbf16>
    %cst = arith.constant dense<0.000000e+00> : vector<128x128xf32>
    %2 = tpu.matmul %0, %1, %cst {dimension_numbers = #tpu.dot_dimension_numbers<[1], [0], [0], [1], [0, 0, 1, 1], [], []>} : vector<128x32xbf16>, vector<32x128xbf16>, vector<128x128xf32> -> vector<128x128xf32>
    %c0_3 = arith.constant 0 : index
    %c0_4 = arith.constant 0 : index
    %3 = vector.load %arg3[%c0_3, %c0_4] : memref<1x128xf32, #tpu.memory_space<vmem>>, vector<1x128xf32>
    %4 = vector.broadcast %3 : vector<1x128xf32> to vector<128x128xf32>
    %5 = arith.addf %2, %4 : vector<128x128xf32>
    %cst_5 = arith.constant 0.000000e+00 : f32
    %6 = vector.broadcast %cst_5 : f32 to vector<128x128xf32>
    %7 = arith.maximumf %5, %6 : vector<128x128xf32>
    %8 = arith.truncf %7 : vector<128x128xf32> to vector<128x128xbf16>
    %c0_6 = arith.constant 0 : index
    %c0_7 = arith.constant 0 : index
    %9 = vector.load %arg4[%c0_6, %c0_7] : memref<128x64xbf16, #tpu.memory_space<vmem>>, vector<128x64xbf16>
    %cst_8 = arith.constant dense<0.000000e+00> : vector<128x64xf32>
    %10 = tpu.matmul %8, %9, %cst_8 {dimension_numbers = #tpu.dot_dimension_numbers<[1], [0], [0], [1], [0, 0, 1, 1], [], []>} : vector<128x128xbf16>, vector<128x64xbf16>, vector<128x64xf32> -> vector<128x64xf32>
    %c0_9 = arith.constant 0 : index
    %c0_10 = arith.constant 0 : index
    %11 = vector.load %arg5[%c0_9, %c0_10] : memref<1x64xf32, #tpu.memory_space<vmem>>, vector<1x64xf32>
    %12 = vector.broadcast %11 : vector<1x64xf32> to vector<128x64xf32>
    %13 = arith.addf %10, %12 : vector<128x64xf32>
    %cst_11 = arith.constant 0.000000e+00 : f32
    %14 = vector.broadcast %cst_11 : f32 to vector<128x64xf32>
    %15 = arith.maximumf %13, %14 : vector<128x64xf32>
    %16 = arith.truncf %15 : vector<128x64xf32> to vector<128x64xbf16>
    %c0_12 = arith.constant 0 : index
    %c0_13 = arith.constant 0 : index
    %17 = vector.load %arg6[%c0_12, %c0_13] : memref<64x2xbf16, #tpu.memory_space<vmem>>, vector<64x2xbf16>
    %cst_14 = arith.constant dense<0.000000e+00> : vector<128x2xf32>
    %18 = tpu.matmul %16, %17, %cst_14 {dimension_numbers = #tpu.dot_dimension_numbers<[1], [0], [0], [1], [0, 0, 1, 1], [], []>} : vector<128x64xbf16>, vector<64x2xbf16>, vector<128x2xf32> -> vector<128x2xf32>
    %c0_15 = arith.constant 0 : index
    %c0_16 = arith.constant 0 : index
    %19 = vector.load %arg7[%c0_15, %c0_16] : memref<1x2xf32, #tpu.memory_space<vmem>>, vector<1x2xf32>
    %20 = vector.broadcast %19 : vector<1x2xf32> to vector<128x2xf32>
    %21 = arith.addf %18, %20 : vector<128x2xf32>
    %c0_17 = arith.constant 0 : index
    %c0_18 = arith.constant 0 : index
    %22 = vector.load %arg8[%c0_17, %c0_18] : memref<128x2xf32, #tpu.memory_space<vmem>>, vector<128x2xf32>
    tpu.vector_store %arg8[%c0_17, %c0_18], %21 {strides = array<i32>} : memref<128x2xf32, #tpu.memory_space<vmem>>, vector<128x2xf32>,
    return
  }
  func.func @transform_0(%arg0: i32) -> (i32, i32) {
    %c0_i32 = arith.constant 0 : i32
    %c0_i32_0 = arith.constant 0 : i32
    return %arg0, %c0_i32 : i32, i32
  }
  func.func @transform_1(%arg0: i32) -> (i32, i32) {
    %c0_i32 = arith.constant 0 : i32
    %c0_i32_0 = arith.constant 0 : i32
    %c0_i32_1 = arith.constant 0 : i32
    return %c0_i32, %c0_i32_0 : i32, i32
  }
  func.func @transform_2(%arg0: i32) -> (i32, i32) {
    %c0_i32 = arith.constant 0 : i32
    %c0_i32_0 = arith.constant 0 : i32
    %c0_i32_1 = arith.constant 0 : i32
    return %c0_i32, %c0_i32_0 : i32, i32
  }
  func.func @transform_3(%arg0: i32) -> (i32, i32) {
    %c0_i32 = arith.constant 0 : i32
    %c0_i32_0 = arith.constant 0 : i32
    %c0_i32_1 = arith.constant 0 : i32
    return %c0_i32, %c0_i32_0 : i32, i32
  }
  func.func @transform_4(%arg0: i32) -> (i32, i32) {
    %c0_i32 = arith.constant 0 : i32
    %c0_i32_0 = arith.constant 0 : i32
    %c0_i32_1 = arith.constant 0 : i32
    return %c0_i32, %c0_i32_0 : i32, i32
  }
  func.func @transform_5(%arg0: i32) -> (i32, i32) {
    %c0_i32 = arith.constant 0 : i32
    %c0_i32_0 = arith.constant 0 : i32
    %c0_i32_1 = arith.constant 0 : i32
    return %c0_i32, %c0_i32_0 : i32, i32
  }
  func.func @transform_6(%arg0: i32) -> (i32, i32) {
    %c0_i32 = arith.constant 0 : i32
    %c0_i32_0 = arith.constant 0 : i32
    %c0_i32_1 = arith.constant 0 : i32
    return %c0_i32, %c0_i32_0 : i32, i32
  }
  func.func @transform_7(%arg0: i32) -> (i32, i32) {
    %c0_i32 = arith.constant 0 : i32
    %c0_i32_0 = arith.constant 0 : i32
    return %arg0, %c0_i32 : i32, i32
  }
}

</mosaic_0001>

<llo_original>
// kernel: simple_nn_forward.1
$region0: #{simple_nn_forward.1}
  #allocation0 [shape = 'u32[]', space=smem, size = 0x4, offset = 0x4, fixed_abs, tag = 'smem constant byte address 0x4 - core index']
  #allocation1 [shape = 'u32[144,128]{1,0:T(1,128)}', space=vmem, size = 0x12000, scoped, tag = 'internal scratch']
  %s0 = inlined_call_operand.vmem [shape: bf16[128,32], index: 0, kind: input, shape index: {}]
  %s1 = inlined_call_operand.vmem [shape: bf16[32,128], index: 1, kind: input, shape index: {}]
  %s2 = inlined_call_operand.vmem [shape: f32[1,128], index: 2, kind: input, shape index: {}]
  %s3 = inlined_call_operand.vmem [shape: bf16[128,64], index: 3, kind: input, shape index: {}]
  %s4 = inlined_call_operand.vmem [shape: f32[1,64], index: 4, kind: input, shape index: {}]
  %s5 = inlined_call_operand.vmem [shape: bf16[64,2], index: 5, kind: input, shape index: {}]
  %s6 = inlined_call_operand.vmem [shape: f32[1,2], index: 6, kind: input, shape index: {}]
  %s7 = inlined_call_operand.vmem [shape: f32[128,2], index: 7, kind: output, shape index: {}]
  %s8 = sld [smem:[#allocation0]]
  $region38: #{simple_nn_forward.1} parent=0
    _
  %s10 = ssub.s32 1, %s8
  %s11 = scalar_select 0, %s10, %s8
  // Predicated region
  $region2: #{simple_nn_forward.1} parent=0 // pred_check
    _
  $region3: #{simple_nn_forward.1} parent=0 // pred_check_branch
    %13 = sbr.rel (0) target = $region5
  $region4: #{simple_nn_forward.1} parent=0 // pred_region
    _
  $region5: #{simple_nn_forward.1} parent=0 // pred_fallthru
    _
  // Predicated region
  $region6: #{simple_nn_forward.1} parent=0 // pred_check
    _
  $region7: #{simple_nn_forward.1} parent=0 // pred_check_branch
    %15 = sbr.rel (0) target = $region9
  $region8: #{simple_nn_forward.1} parent=0 // pred_region
    _
  $region9: #{simple_nn_forward.1} parent=0 // pred_fallthru
    _
  // Predicated region
  $region10: #{simple_nn_forward.1} parent=0 // pred_check
    _
  $region11: #{simple_nn_forward.1} parent=0 // pred_check_branch
    %17 = sbr.rel (0) target = $region13
  $region12: #{simple_nn_forward.1} parent=0 // pred_region
    _
  $region13: #{simple_nn_forward.1} parent=0 // pred_fallthru
    _
  // Predicated region
  $region14: #{simple_nn_forward.1} parent=0 // pred_check
    _
  $region15: #{simple_nn_forward.1} parent=0 // pred_check_branch
    %19 = sbr.rel (0) target = $region17
  $region16: #{simple_nn_forward.1} parent=0 // pred_region
    _
  $region17: #{simple_nn_forward.1} parent=0 // pred_fallthru
    _
  // Predicated region
  $region18: #{simple_nn_forward.1} parent=0 // pred_check
    _
  $region19: #{simple_nn_forward.1} parent=0 // pred_check_branch
    %21 = sbr.rel (0) target = $region21
  $region20: #{simple_nn_forward.1} parent=0 // pred_region
    _
  $region21: #{simple_nn_forward.1} parent=0 // pred_fallthru
    _
  // Predicated region
  $region22: #{simple_nn_forward.1} parent=0 // pred_check
    _
  $region23: #{simple_nn_forward.1} parent=0 // pred_check_branch
    %23 = sbr.rel (0) target = $region25
  $region24: #{simple_nn_forward.1} parent=0 // pred_region
    _
  $region25: #{simple_nn_forward.1} parent=0 // pred_fallthru
    _
  // Predicated region
  $region26: #{simple_nn_forward.1} parent=0 // pred_check
    _
  $region27: #{simple_nn_forward.1} parent=0 // pred_check_branch
    %25 = sbr.rel (0) target = $region29
  $region28: #{simple_nn_forward.1} parent=0 // pred_region
    _
  $region29: #{simple_nn_forward.1} parent=0 // pred_fallthru
    _
  %v27 = vld [vmem:[%s0] sm:$0xf]
  %v28 = vld [vmem:[%s0 + $0x4] sm:$0xf]
  %v29 = vld [vmem:[%s0 + $0x8] sm:$0xf]
  %v30 = vld [vmem:[%s0 + $0xc] sm:$0xf]
  %v31 = vld [vmem:[%s0 + $0x10] sm:$0xf]
  %v32 = vld [vmem:[%s0 + $0x14] sm:$0xf]
  %v33 = vld [vmem:[%s0 + $0x18] sm:$0xf]
  %v34 = vld [vmem:[%s0 + $0x1c] sm:$0xf]
  %v35 = vld [vmem:[%s0 + $0x20] sm:$0xf]
  %v36 = vld [vmem:[%s0 + $0x24] sm:$0xf]
  %v37 = vld [vmem:[%s0 + $0x28] sm:$0xf]
  %v38 = vld [vmem:[%s0 + $0x2c] sm:$0xf]
  %v39 = vld [vmem:[%s0 + $0x30] sm:$0xf]
  %v40 = vld [vmem:[%s0 + $0x34] sm:$0xf]
  %v41 = vld [vmem:[%s0 + $0x38] sm:$0xf]
  %v42 = vld [vmem:[%s0 + $0x3c] sm:$0xf]
  %v43 = vld [vmem:[%s1] sm:$0xf]
  %v44 = vld [vmem:[%s1 + $0x4] sm:$0xf]
  %v45 = vld [vmem:[%s1 + $0x8] sm:$0xf]
  %v46 = vld [vmem:[%s1 + $0xc] sm:$0xf]
  %v47 = vld [vmem:[%s2] sm:$0x1]
  %v49 = vlaneseq
  %v50 = vshrl.u32 %v49, 7
  %v51 = vsub.s32 0, %v50
  %v52 = vrot.slane %v47, %v51
  %v70 = vunpack.c.l.b16 %v27
  %v71 = vunpack.c.l.b16 %v28
  %v72 = vunpack.c.l.b16 %v29
  %v73 = vunpack.c.l.b16 %v30
  %v74 = vunpack.c.l.b16 %v31
  %v75 = vunpack.c.l.b16 %v32
  %v76 = vunpack.c.l.b16 %v33
  %v77 = vunpack.c.l.b16 %v34
  %v78 = vunpack.c.l.b16 %v35
  %v79 = vunpack.c.l.b16 %v36
  %v80 = vunpack.c.l.b16 %v37
  %v81 = vunpack.c.l.b16 %v38
  %v82 = vunpack.c.l.b16 %v39
  %v83 = vunpack.c.l.b16 %v40
  %v84 = vunpack.c.l.b16 %v41
  %v85 = vunpack.c.l.b16 %v42
  %v86 = vpack.c.b16 %v71, %v70
  %v87 = vpack.c.b16 %v73, %v72
  %v88 = vpack.c.b16 %v75, %v74
  %v89 = vpack.c.b16 %v77, %v76
  %v90 = vpack.c.b16 %v79, %v78
  %v91 = vpack.c.b16 %v81, %v80
  %v92 = vpack.c.b16 %v83, %v82
  %v93 = vpack.c.b16 %v85, %v84
  %v98 = vunpack.c.l.b16 %v43
  %v99 = vunpack.c.l.b16 %v44
  %v100 = vunpack.c.l.b16 %v45
  %v101 = vunpack.c.l.b16 %v46
  %v102 = vpack.c.b16 %v99, %v98
  %v103 = vpack.c.b16 %v101, %v100
  %vm106 = vcmask 261120
  %v108 = vsel %vm106, %v86, 0
  %v111 = vsel %vm106, %v87, 0
  %v114 = vsel %vm106, %v88, 0
  %v117 = vsel %vm106, %v89, 0
  %v120 = vsel %vm106, %v90, 0
  %v123 = vsel %vm106, %v91, 0
  %v126 = vsel %vm106, %v92, 0
  %v129 = vsel %vm106, %v93, 0
  %131 = vmatprep.subr.bf16.mxu0 0
  %132 = vmatpush1.bf16.msra.mxu0 0
  %133 = vmatprep.subr.bf16.mxu0 0
  %134 = vmatpush1.bf16.msra.mxu0 0
  %135 = vmatprep.subr.bf16.mxu0 0
  %136 = vmatpush1.bf16.msra.mxu0 0
  %137 = vmatprep.subr.bf16.mxu0 0
  %138 = vmatpush1.bf16.msra.mxu0 0
  %139 = vmatprep.subr.bf16.mxu0 0
  %140 = vmatpush1.bf16.msra.mxu0 0
  %141 = vmatprep.subr.bf16.mxu0 0
  %142 = vmatpush1.bf16.msra.mxu0 0
  %143 = vmatprep.subr.bf16.mxu0 0
  %144 = vmatpush1.bf16.msra.mxu0 %v103
  %145 = vmatprep.subr.bf16.mxu0 0
  %146 = vmatpush1.bf16.msra.mxu0 %v102
  %147 = vmatprep.subr.bf16.mxu0 0
  %148 = vmatpush2.bf16.msra.mxu0 0
  %149 = vmatprep.subr.bf16.mxu0 0
  %150 = vmatpush2.bf16.msra.mxu0 0
  %151 = vmatprep.subr.bf16.mxu0 0
  %152 = vmatpush2.bf16.msra.mxu0 0
  %153 = vmatprep.subr.bf16.mxu0 0
  %154 = vmatpush2.bf16.msra.mxu0 0
  %155 = vmatprep.subr.bf16.mxu0 0
  %156 = vmatpush2.bf16.msra.mxu0 0
  %157 = vmatprep.subr.bf16.mxu0 0
  %158 = vmatpush2.bf16.msra.mxu0 0
  %159 = vmatprep.subr.bf16.mxu0 0
  %160 = vmatpush2.bf16.msra.mxu0 0
  %161 = vmatprep.subr.bf16.mxu0 0
  %162 = vmatpush2.bf16.msra.mxu0 0
  %163 = vmatprep.mubr.bf16.mxu0 0
  %164 = vmatmul.mubr.bf16.gmra.mxu0 %v108
  %v165 = vpop.f32.mrf.mxu0
  %v166 = vadd.f32 %v52, %v165
  %v167 = vpop.f32.mrf.mxu0
  %v168 = vpop.f32.mrf.mxu0
  %v169 = vadd.f32 %v52, %v168
  %v170 = vpop.f32.mrf.mxu0
  %171 = vmatprep.mubr.bf16.mxu0 0
  %172 = vmatmul.mubr.bf16.gmra.mxu0 %v111
  %v173 = vpop.f32.mrf.mxu0
  %v174 = vadd.f32 %v52, %v173
  %v175 = vpop.f32.mrf.mxu0
  %v176 = vpop.f32.mrf.mxu0
  %v177 = vadd.f32 %v52, %v176
  %v178 = vpop.f32.mrf.mxu0
  %179 = vmatprep.mubr.bf16.mxu0 0
  %180 = vmatmul.mubr.bf16.gmra.mxu0 %v114
  %v181 = vpop.f32.mrf.mxu0
  %v182 = vadd.f32 %v52, %v181
  %v183 = vpop.f32.mrf.mxu0
  %v184 = vpop.f32.mrf.mxu0
  %v185 = vadd.f32 %v52, %v184
  %v186 = vpop.f32.mrf.mxu0
  %187 = vmatprep.mubr.bf16.mxu0 0
  %188 = vmatmul.mubr.bf16.gmra.mxu0 %v117
  %v189 = vpop.f32.mrf.mxu0
  %v190 = vadd.f32 %v52, %v189
  %v191 = vpop.f32.mrf.mxu0
  %v192 = vpop.f32.mrf.mxu0
  %v193 = vadd.f32 %v52, %v192
  %v194 = vpop.f32.mrf.mxu0
  %195 = vmatprep.mubr.bf16.mxu0 0
  %196 = vmatmul.mubr.bf16.gmra.mxu0 %v120
  %v197 = vpop.f32.mrf.mxu0
  %v198 = vadd.f32 %v52, %v197
  %v199 = vpop.f32.mrf.mxu0
  %v200 = vpop.f32.mrf.mxu0
  %v201 = vadd.f32 %v52, %v200
  %v202 = vpop.f32.mrf.mxu0
  %203 = vmatprep.mubr.bf16.mxu0 0
  %204 = vmatmul.mubr.bf16.gmra.mxu0 %v123
  %v205 = vpop.f32.mrf.mxu0
  %v206 = vadd.f32 %v52, %v205
  %v207 = vpop.f32.mrf.mxu0
  %v208 = vpop.f32.mrf.mxu0
  %v209 = vadd.f32 %v52, %v208
  %v210 = vpop.f32.mrf.mxu0
  %211 = vmatprep.mubr.bf16.mxu0 0
  %212 = vmatmul.mubr.bf16.gmra.mxu0 %v126
  %v213 = vpop.f32.mrf.mxu0
  %v214 = vadd.f32 %v52, %v213
  %v215 = vpop.f32.mrf.mxu0
  %v216 = vpop.f32.mrf.mxu0
  %v217 = vadd.f32 %v52, %v216
  %v218 = vpop.f32.mrf.mxu0
  %219 = vmatprep.mubr.bf16.mxu0 0
  %220 = vmatmul.mubr.bf16.gmra.mxu0 %v129
  %v221 = vpop.f32.mrf.mxu0
  %v222 = vadd.f32 %v52, %v221
  %v223 = vpop.f32.mrf.mxu0
  %v224 = vpop.f32.mrf.mxu0
  %v225 = vadd.f32 %v52, %v224
  %v226 = vpop.f32.mrf.mxu0
  %227 = vdwg.mxu0
  %v228 = vmax.f32 %v166, 0.0
  %v229 = vmax.f32 %v169, 0.0
  %v230 = vmax.f32 %v174, 0.0
  %v231 = vmax.f32 %v177, 0.0
  %v232 = vmax.f32 %v182, 0.0
  %v233 = vmax.f32 %v185, 0.0
  %v234 = vmax.f32 %v190, 0.0
  %v235 = vmax.f32 %v193, 0.0
  %v236 = vmax.f32 %v198, 0.0
  %v237 = vmax.f32 %v201, 0.0
  %v238 = vmax.f32 %v206, 0.0
  %v239 = vmax.f32 %v209, 0.0
  %v240 = vmax.f32 %v214, 0.0
  %v241 = vmax.f32 %v217, 0.0
  %v242 = vmax.f32 %v222, 0.0
  %v243 = vmax.f32 %v225, 0.0
  %v244 = vpack.c.bf16 %v229, %v228
  %v245 = vpack.c.bf16 %v231, %v230
  %v246 = vpack.c.bf16 %v233, %v232
  %v247 = vpack.c.bf16 %v235, %v234
  %v248 = vpack.c.bf16 %v237, %v236
  %v249 = vpack.c.bf16 %v239, %v238
  %v250 = vpack.c.bf16 %v241, %v240
  %v251 = vpack.c.bf16 %v243, %v242
  %v252 = vld [vmem:[%s3] sm:$0xf]
  %v253 = vld [vmem:[%s3 + $0x4] sm:$0xf]
  %v254 = vld [vmem:[%s3 + $0x8] sm:$0xf]
  %v255 = vld [vmem:[%s3 + $0xc] sm:$0xf]
  %v256 = vld [vmem:[%s3 + $0x10] sm:$0xf]
  %v257 = vld [vmem:[%s3 + $0x14] sm:$0xf]
  %v258 = vld [vmem:[%s3 + $0x18] sm:$0xf]
  %v259 = vld [vmem:[%s3 + $0x1c] sm:$0xf]
  %v260 = vld [vmem:[%s3 + $0x20] sm:$0xf]
  %v261 = vld [vmem:[%s3 + $0x24] sm:$0xf]
  %v262 = vld [vmem:[%s3 + $0x28] sm:$0xf]
  %v263 = vld [vmem:[%s3 + $0x2c] sm:$0xf]
  %v264 = vld [vmem:[%s3 + $0x30] sm:$0xf]
  %v265 = vld [vmem:[%s3 + $0x34] sm:$0xf]
  %v266 = vld [vmem:[%s3 + $0x38] sm:$0xf]
  %v267 = vld [vmem:[%s3 + $0x3c] sm:$0xf]
  %v268 = vld [vmem:[%s4] sm:$0x1]
  %v270 = vlaneseq
  %v271 = vshrl.u32 %v270, 7
  %v272 = vsub.s32 0, %v271
  %v273 = vrot.slane %v268, %v272
  %v291 = vunpack.c.l.b16 %v252
  %v292 = vunpack.c.l.b16 %v253
  %v293 = vunpack.c.l.b16 %v254
  %v294 = vunpack.c.l.b16 %v255
  %v295 = vunpack.c.l.b16 %v256
  %v296 = vunpack.c.l.b16 %v257
  %v297 = vunpack.c.l.b16 %v258
  %v298 = vunpack.c.l.b16 %v259
  %v299 = vunpack.c.l.b16 %v260
  %v300 = vunpack.c.l.b16 %v261
  %v301 = vunpack.c.l.b16 %v262
  %v302 = vunpack.c.l.b16 %v263
  %v303 = vunpack.c.l.b16 %v264
  %v304 = vunpack.c.l.b16 %v265
  %v305 = vunpack.c.l.b16 %v266
  %v306 = vunpack.c.l.b16 %v267
  %v307 = vpack.c.b16 %v292, %v291
  %v308 = vpack.c.b16 %v294, %v293
  %v309 = vpack.c.b16 %v296, %v295
  %v310 = vpack.c.b16 %v298, %v297
  %v311 = vpack.c.b16 %v300, %v299
  %v312 = vpack.c.b16 %v302, %v301
  %v313 = vpack.c.b16 %v304, %v303
  %v314 = vpack.c.b16 %v306, %v305
  %323 = vmatprep.subr.bf16.mxu0 0
  %324 = vmatpush1.bf16.msra.mxu0 %v314
  %325 = vmatprep.subr.bf16.mxu0 0
  %326 = vmatpush1.bf16.msra.mxu0 %v313
  %327 = vmatprep.subr.bf16.mxu0 0
  %328 = vmatpush1.bf16.msra.mxu0 %v312
  %329 = vmatprep.subr.bf16.mxu0 0
  %330 = vmatpush1.bf16.msra.mxu0 %v311
  %331 = vmatprep.subr.bf16.mxu0 0
  %332 = vmatpush1.bf16.msra.mxu0 %v310
  %333 = vmatprep.subr.bf16.mxu0 0
  %334 = vmatpush1.bf16.msra.mxu0 %v309
  %335 = vmatprep.subr.bf16.mxu0 0
  %336 = vmatpush1.bf16.msra.mxu0 %v308
  %337 = vmatprep.subr.bf16.mxu0 0
  %338 = vmatpush1.bf16.msra.mxu0 %v307
  %339 = vmatprep.subr.bf16.mxu0 0
  %340 = vmatpush2.bf16.msra.mxu0 0
  %341 = vmatprep.subr.bf16.mxu0 0
  %342 = vmatpush2.bf16.msra.mxu0 0
  %343 = vmatprep.subr.bf16.mxu0 0
  %344 = vmatpush2.bf16.msra.mxu0 0
  %345 = vmatprep.subr.bf16.mxu0 0
  %346 = vmatpush2.bf16.msra.mxu0 0
  %347 = vmatprep.subr.bf16.mxu0 0
  %348 = vmatpush2.bf16.msra.mxu0 0
  %349 = vmatprep.subr.bf16.mxu0 0
  %350 = vmatpush2.bf16.msra.mxu0 0
  %351 = vmatprep.subr.bf16.mxu0 0
  %352 = vmatpush2.bf16.msra.mxu0 0
  %353 = vmatprep.subr.bf16.mxu0 0
  %354 = vmatpush2.bf16.msra.mxu0 0
  %355 = vmatprep.mubr.bf16.mxu0 0
  %356 = vmatmul.mubr.bf16.gmra.mxu0 %v244
  %v357 = vpop.f32.mrf.mxu0
  %v358 = vadd.f32 %v273, %v357
  %v359 = vpop.f32.mrf.mxu0
  %v360 = vpop.f32.mrf.mxu0
  %v361 = vadd.f32 %v273, %v360
  %v362 = vpop.f32.mrf.mxu0
  %363 = vmatprep.mubr.bf16.mxu0 0
  %364 = vmatmul.mubr.bf16.gmra.mxu0 %v245
  %v365 = vpop.f32.mrf.mxu0
  %v366 = vadd.f32 %v273, %v365
  %v367 = vpop.f32.mrf.mxu0
  %v368 = vpop.f32.mrf.mxu0
  %v369 = vadd.f32 %v273, %v368
  %v370 = vpop.f32.mrf.mxu0
  %371 = vmatprep.mubr.bf16.mxu0 0
  %372 = vmatmul.mubr.bf16.gmra.mxu0 %v246
  %v373 = vpop.f32.mrf.mxu0
  %v374 = vadd.f32 %v273, %v373
  %v375 = vpop.f32.mrf.mxu0
  %v376 = vpop.f32.mrf.mxu0
  %v377 = vadd.f32 %v273, %v376
  %v378 = vpop.f32.mrf.mxu0
  %379 = vmatprep.mubr.bf16.mxu0 0
  %380 = vmatmul.mubr.bf16.gmra.mxu0 %v247
  %v381 = vpop.f32.mrf.mxu0
  %v382 = vadd.f32 %v273, %v381
  %v383 = vpop.f32.mrf.mxu0
  %v384 = vpop.f32.mrf.mxu0
  %v385 = vadd.f32 %v273, %v384
  %v386 = vpop.f32.mrf.mxu0
  %387 = vmatprep.mubr.bf16.mxu0 0
  %388 = vmatmul.mubr.bf16.gmra.mxu0 %v248
  %v389 = vpop.f32.mrf.mxu0
  %v390 = vadd.f32 %v273, %v389
  %v391 = vpop.f32.mrf.mxu0
  %v392 = vpop.f32.mrf.mxu0
  %v393 = vadd.f32 %v273, %v392
  %v394 = vpop.f32.mrf.mxu0
  %395 = vmatprep.mubr.bf16.mxu0 0
  %396 = vmatmul.mubr.bf16.gmra.mxu0 %v249
  %v397 = vpop.f32.mrf.mxu0
  %v398 = vadd.f32 %v273, %v397
  %v399 = vpop.f32.mrf.mxu0
  %v400 = vpop.f32.mrf.mxu0
  %v401 = vadd.f32 %v273, %v400
  %v402 = vpop.f32.mrf.mxu0
  %403 = vmatprep.mubr.bf16.mxu0 0
  %404 = vmatmul.mubr.bf16.gmra.mxu0 %v250
  %v405 = vpop.f32.mrf.mxu0
  %v406 = vadd.f32 %v273, %v405
  %v407 = vpop.f32.mrf.mxu0
  %v408 = vpop.f32.mrf.mxu0
  %v409 = vadd.f32 %v273, %v408
  %v410 = vpop.f32.mrf.mxu0
  %411 = vmatprep.mubr.bf16.mxu0 0
  %412 = vmatmul.mubr.bf16.gmra.mxu0 %v251
  %v413 = vpop.f32.mrf.mxu0
  %v414 = vadd.f32 %v273, %v413
  %v415 = vpop.f32.mrf.mxu0
  %v416 = vpop.f32.mrf.mxu0
  %v417 = vadd.f32 %v273, %v416
  %v418 = vpop.f32.mrf.mxu0
  %419 = vdwg.mxu0
  %v420 = vmax.f32 %v358, 0.0
  %v421 = vmax.f32 %v361, 0.0
  %v422 = vmax.f32 %v366, 0.0
  %v423 = vmax.f32 %v369, 0.0
  %v424 = vmax.f32 %v374, 0.0
  %v425 = vmax.f32 %v377, 0.0
  %v426 = vmax.f32 %v382, 0.0
  %v427 = vmax.f32 %v385, 0.0
  %v428 = vmax.f32 %v390, 0.0
  %v429 = vmax.f32 %v393, 0.0
  %v430 = vmax.f32 %v398, 0.0
  %v431 = vmax.f32 %v401, 0.0
  %v432 = vmax.f32 %v406, 0.0
  %v433 = vmax.f32 %v409, 0.0
  %v434 = vmax.f32 %v414, 0.0
  %v435 = vmax.f32 %v417, 0.0
  %v436 = vpack.c.bf16 %v421, %v420
  %v437 = vpack.c.bf16 %v423, %v422
  %v438 = vpack.c.bf16 %v425, %v424
  %v439 = vpack.c.bf16 %v427, %v426
  %v440 = vpack.c.bf16 %v429, %v428
  %v441 = vpack.c.bf16 %v431, %v430
  %v442 = vpack.c.bf16 %v433, %v432
  %v443 = vpack.c.bf16 %v435, %v434
  %v444 = vld [vmem:[%s5] sm:$0xf]
  %v445 = vld [vmem:[%s5 + $0x4] sm:$0xf]
  %v446 = vld [vmem:[%s5 + $0x8] sm:$0xf]
  %v447 = vld [vmem:[%s5 + $0xc] sm:$0xf]
  %v448 = vld [vmem:[%s5 + $0x10] sm:$0xf]
  %v449 = vld [vmem:[%s5 + $0x14] sm:$0xf]
  %v450 = vld [vmem:[%s5 + $0x18] sm:$0xf]
  %v451 = vld [vmem:[%s5 + $0x1c] sm:$0xf]
  %v452 = vld [vmem:[%s6] sm:$0x1]
  %v454 = vlaneseq
  %v455 = vshrl.u32 %v454, 7
  %v456 = vsub.s32 0, %v455
  %v457 = vrot.slane %v452, %v456
  %v467 = vunpack.c.l.b16 %v444
  %v468 = vunpack.c.l.b16 %v445
  %v469 = vunpack.c.l.b16 %v446
  %v470 = vunpack.c.l.b16 %v447
  %v471 = vunpack.c.l.b16 %v448
  %v472 = vunpack.c.l.b16 %v449
  %v473 = vunpack.c.l.b16 %v450
  %v474 = vunpack.c.l.b16 %v451
  %v475 = vpack.c.b16 %v468, %v467
  %v476 = vpack.c.b16 %v470, %v469
  %v477 = vpack.c.b16 %v472, %v471
  %v478 = vpack.c.b16 %v474, %v473
  %vm483 = vcmask 523264
  %v485 = vsel %vm483, %v436, 0
  %v488 = vsel %vm483, %v437, 0
  %v491 = vsel %vm483, %v438, 0
  %v494 = vsel %vm483, %v439, 0
  %v497 = vsel %vm483, %v440, 0
  %v500 = vsel %vm483, %v441, 0
  %v503 = vsel %vm483, %v442, 0
  %v506 = vsel %vm483, %v443, 0
  %508 = vmatprep.subr.bf16.mxu0 0
  %509 = vmatpush1.bf16.msra.mxu0 0
  %510 = vmatprep.subr.bf16.mxu0 0
  %511 = vmatpush1.bf16.msra.mxu0 0
  %512 = vmatprep.subr.bf16.mxu0 0
  %513 = vmatpush1.bf16.msra.mxu0 0
  %514 = vmatprep.subr.bf16.mxu0 0
  %515 = vmatpush1.bf16.msra.mxu0 0
  %516 = vmatprep.subr.bf16.mxu0 0
  %517 = vmatpush1.bf16.msra.mxu0 %v478
  %518 = vmatprep.subr.bf16.mxu0 0
  %519 = vmatpush1.bf16.msra.mxu0 %v477
  %520 = vmatprep.subr.bf16.mxu0 0
  %521 = vmatpush1.bf16.msra.mxu0 %v476
  %522 = vmatprep.subr.bf16.mxu0 0
  %523 = vmatpush1.bf16.msra.mxu0 %v475
  %524 = vmatprep.subr.bf16.mxu0 0
  %525 = vmatpush2.bf16.msra.mxu0 0
  %526 = vmatprep.subr.bf16.mxu0 0
  %527 = vmatpush2.bf16.msra.mxu0 0
  %528 = vmatprep.subr.bf16.mxu0 0
  %529 = vmatpush2.bf16.msra.mxu0 0
  %530 = vmatprep.subr.bf16.mxu0 0
  %531 = vmatpush2.bf16.msra.mxu0 0
  %532 = vmatprep.subr.bf16.mxu0 0
  %533 = vmatpush2.bf16.msra.mxu0 0
  %534 = vmatprep.subr.bf16.mxu0 0
  %535 = vmatpush2.bf16.msra.mxu0 0
  %536 = vmatprep.subr.bf16.mxu0 0
  %537 = vmatpush2.bf16.msra.mxu0 0
  %538 = vmatprep.subr.bf16.mxu0 0
  %539 = vmatpush2.bf16.msra.mxu0 0
  %540 = vmatprep.mubr.bf16.mxu0 0
  %541 = vmatmul.mubr.bf16.gmra.mxu0 %v485
  %v542 = vpop.f32.mrf.mxu0
  %v543 = vadd.f32 %v457, %v542
  %v544 = vpop.f32.mrf.mxu0
  %v545 = vpop.f32.mrf.mxu0
  %v546 = vadd.f32 %v457, %v545
  %v547 = vpop.f32.mrf.mxu0
  %548 = vmatprep.mubr.bf16.mxu0 0
  %549 = vmatmul.mubr.bf16.gmra.mxu0 %v488
  %v550 = vpop.f32.mrf.mxu0
  %v551 = vadd.f32 %v457, %v550
  %v552 = vpop.f32.mrf.mxu0
  %v553 = vpop.f32.mrf.mxu0
  %v554 = vadd.f32 %v457, %v553
  %v555 = vpop.f32.mrf.mxu0
  %556 = vmatprep.mubr.bf16.mxu0 0
  %557 = vmatmul.mubr.bf16.gmra.mxu0 %v491
  %v558 = vpop.f32.mrf.mxu0
  %v559 = vadd.f32 %v457, %v558
  %v560 = vpop.f32.mrf.mxu0
  %v561 = vpop.f32.mrf.mxu0
  %v562 = vadd.f32 %v457, %v561
  %v563 = vpop.f32.mrf.mxu0
  %564 = vmatprep.mubr.bf16.mxu0 0
  %565 = vmatmul.mubr.bf16.gmra.mxu0 %v494
  %v566 = vpop.f32.mrf.mxu0
  %v567 = vadd.f32 %v457, %v566
  %v568 = vpop.f32.mrf.mxu0
  %v569 = vpop.f32.mrf.mxu0
  %v570 = vadd.f32 %v457, %v569
  %v571 = vpop.f32.mrf.mxu0
  %572 = vmatprep.mubr.bf16.mxu0 0
  %573 = vmatmul.mubr.bf16.gmra.mxu0 %v497
  %v574 = vpop.f32.mrf.mxu0
  %v575 = vadd.f32 %v457, %v574
  %v576 = vpop.f32.mrf.mxu0
  %v577 = vpop.f32.mrf.mxu0
  %v578 = vadd.f32 %v457, %v577
  %v579 = vpop.f32.mrf.mxu0
  %580 = vmatprep.mubr.bf16.mxu0 0
  %581 = vmatmul.mubr.bf16.gmra.mxu0 %v500
  %v582 = vpop.f32.mrf.mxu0
  %v583 = vadd.f32 %v457, %v582
  %v584 = vpop.f32.mrf.mxu0
  %v585 = vpop.f32.mrf.mxu0
  %v586 = vadd.f32 %v457, %v585
  %v587 = vpop.f32.mrf.mxu0
  %588 = vmatprep.mubr.bf16.mxu0 0
  %589 = vmatmul.mubr.bf16.gmra.mxu0 %v503
  %v590 = vpop.f32.mrf.mxu0
  %v591 = vadd.f32 %v457, %v590
  %v592 = vpop.f32.mrf.mxu0
  %v593 = vpop.f32.mrf.mxu0
  %v594 = vadd.f32 %v457, %v593
  %v595 = vpop.f32.mrf.mxu0
  %596 = vmatprep.mubr.bf16.mxu0 0
  %597 = vmatmul.mubr.bf16.gmra.mxu0 %v506
  %v598 = vpop.f32.mrf.mxu0
  %v599 = vadd.f32 %v457, %v598
  %v600 = vpop.f32.mrf.mxu0
  %v601 = vpop.f32.mrf.mxu0
  %v602 = vadd.f32 %v457, %v601
  %v603 = vpop.f32.mrf.mxu0
  %604 = vdwg.mxu0
  %vm605 = vcmask 15360
  %606 = vst.msk [vmem:[%s7] sm:$0xff] %vm605, %v543
  %607 = vst.msk [vmem:[%s7 + $0x8] sm:$0xff] %vm605, %v546
  %608 = vst.msk [vmem:[%s7 + $0x10] sm:$0xff] %vm605, %v551
  %609 = vst.msk [vmem:[%s7 + $0x18] sm:$0xff] %vm605, %v554
  %610 = vst.msk [vmem:[%s7 + $0x20] sm:$0xff] %vm605, %v559
  %611 = vst.msk [vmem:[%s7 + $0x28] sm:$0xff] %vm605, %v562
  %612 = vst.msk [vmem:[%s7 + $0x30] sm:$0xff] %vm605, %v567
  %613 = vst.msk [vmem:[%s7 + $0x38] sm:$0xff] %vm605, %v570
  %614 = vst.msk [vmem:[%s7 + $0x40] sm:$0xff] %vm605, %v575
  %615 = vst.msk [vmem:[%s7 + $0x48] sm:$0xff] %vm605, %v578
  %616 = vst.msk [vmem:[%s7 + $0x50] sm:$0xff] %vm605, %v583
  %617 = vst.msk [vmem:[%s7 + $0x58] sm:$0xff] %vm605, %v586
  %618 = vst.msk [vmem:[%s7 + $0x60] sm:$0xff] %vm605, %v591
  %619 = vst.msk [vmem:[%s7 + $0x68] sm:$0xff] %vm605, %v594
  %620 = vst.msk [vmem:[%s7 + $0x70] sm:$0xff] %vm605, %v599
  %621 = vst.msk [vmem:[%s7 + $0x78] sm:$0xff] %vm605, %v602
  // Predicated region
  $region30: #{simple_nn_forward.1} parent=0 // pred_check
    _
  $region31: #{simple_nn_forward.1} parent=0 // pred_check_branch
    %623 = sbr.rel (0) target = $region33
  $region32: #{simple_nn_forward.1} parent=0 // pred_region
    _
  $region33: #{simple_nn_forward.1} parent=0 // pred_fallthru
    _
  // Predicated region
  $region34: #{simple_nn_forward.1} parent=0 // pred_check
    _
  $region35: #{simple_nn_forward.1} parent=0 // pred_check_branch
    %625 = sbr.rel (0) target = $region37
  $region36: #{simple_nn_forward.1} parent=0 // pred_region
    _
  $region37: #{simple_nn_forward.1} parent=0 // pred_fallthru
    _

</llo_original>
